<compile_context>
chip_gen: v7x
topology: tpu7x:2x2x1
jax: 0.10.0
libtpu: 0.0.40
codegen_flags: <defaults>
</compile_context>

<pallas_src>
import jax
import jax.numpy as jnp
import numpy as np
from jax import lax
from jax.experimental import pallas as pl
from jax.experimental.pallas import tpu as pltpu


def _enc_kernel(xc_ref, halo_ref, w_ref, b_ref, o_ref):
    """One (batch, output-tile) grid step.

    xc_ref:   (1, T_in, stride)   chunks [t0, t0+T_in) of this batch element
    halo_ref: (1, 1, 1, stride)   chunk t0+T_out (2nd half of the tile's last frame)
    w_ref:    (2C, stride)        rows [0:C) = W[:, :stride], rows [C:2C) = W[:, stride:]
    b_ref:    (C, 1)
    o_ref:    (1, C, T_out)
    """
    c_out = b_ref.shape[0]
    t_out = o_ref.shape[2]

    chunks = xc_ref[0]          # (T_in, stride)
    w = w_ref[...]              # (2C, stride)

    # Stacked half-kernel matmul, contracting the stride dim of both operands
    # (q @ k^T orientation): (2C, stride) x (T_in, stride) -> (2C, T_in).
    # Lane dim of the result is T_in (multiple of 128 in the tiled case).
    dn = (((1,), (1,)), ((), ()))
    stacked = lax.dot_general(w, chunks, dn, preferred_element_type=jnp.float32)

    first = stacked[:c_out, :t_out]        # W1 . chunk[t0 + i]
    second_all = stacked[c_out:, :]        # W2 . chunk[t0 + i]

    # Column for the tile's last frame: W2 . chunk[t0 + T_out]  (halo chunk; tiny
    # VPU multiply + cross-lane reduce, off the matmul critical path).
    halo = halo_ref[0, 0].astype(jnp.float32)                    # (1, stride)
    hcol = jnp.sum(w[c_out:, :] * halo, axis=1, keepdims=True)   # (C, 1)

    # second[:, i] = W2 . chunk[t0 + i + 1]  -> shift left by one output column and
    # append the halo column.
    if t_out > 1:
        second = jnp.concatenate([second_all[:, 1:t_out], hcol], axis=1)   # (C, T_out)
    else:
        second = hcol

    y = first + second + b_ref[...]                # f32 bias add
    o_ref[0] = jnp.maximum(y, 0.0).astype(o_ref.dtype)


def encoding_layer(x, weight, bias, kernel_size, *, tile_t=1024):
    """relu(conv1d(x, weight, bias, stride=kernel_size//2)).

    x: (B, 1, S), weight: (C, 1, K), bias: (C,) -> (B, C, L_out),
    L_out = (S - K) // (K // 2) + 1  (PyTorch Conv1d 'valid' semantics).
    """
    stride = kernel_size // 2
    B, cin, S = x.shape
    C, _, K = weight.shape
    assert cin == 1 and K == kernel_size and S >= K
    # TODO(synk): odd kernel_size (stride != K/2) would need a third partial-chunk matmul.
    assert K % 2 == 0

    n_chunks = S // stride
    L_out = n_chunks - 1        # == (S - K) // stride + 1

    # Free view of x as half-kernel chunks (contiguous reshape, no extra HBM pass).
    xc = x[:, 0, : n_chunks * stride].reshape(B, n_chunks, stride)

    # Lane-dense output tiling.
    if L_out >= 128:
        t_cap = max(128, (tile_t // 128) * 128)
        T_out = min(t_cap, (L_out // 128) * 128)    # multiple of 128, <= L_out
        T_in = T_out
    else:
        T_out = L_out                               # single full-dim block (always legal)
        T_in = n_chunks
    n_tiles = pl.cdiv(L_out, T_out)

    # One halo chunk per (batch, tile): chunk index (j+1)*T_out, clamped.  Clamping only
    # affects output columns >= L_out, which are masked away on writeback.
    halo_idx = np.minimum(np.arange(1, n_tiles + 1) * T_out, n_chunks - 1)
    halo = xc[:, halo_idx, :][:, :, None, :]        # (B, n_tiles, 1, stride) -- negligible

    w2d = weight[:, 0, :].astype(jnp.float32)
    wstack = jnp.concatenate([w2d[:, :stride], w2d[:, stride:]], axis=0)   # (2C, stride)
    b2 = bias.astype(jnp.float32)[:, None]                                 # (C, 1)

    itemsize = jnp.dtype(x.dtype).itemsize
    cost = pl.CostEstimate(
        flops=2 * B * L_out * C * K,
        transcendentals=0,
        bytes_accessed=(B * n_chunks * stride * itemsize           # chunk reads
                        + B * n_tiles * stride * itemsize          # halo reads
                        + 2 * C * stride * 4 + C * 4               # weights + bias
                        + B * C * L_out * itemsize))               # output writes

    return pl.pallas_call(
        _enc_kernel,
        out_shape=jax.ShapeDtypeStruct((B, C, L_out), x.dtype),
        grid=(B, n_tiles),
        in_specs=[
            pl.BlockSpec((1, T_in, stride), lambda b, j: (b, j, 0)),     # chunk tile
            pl.BlockSpec((1, 1, 1, stride), lambda b, j: (b, j, 0, 0)),  # halo chunk
            pl.BlockSpec((2 * C, stride), lambda b, j: (0, 0)),          # weights (resident)
            pl.BlockSpec((C, 1), lambda b, j: (0, 0)),                   # bias    (resident)
        ],
        out_specs=pl.BlockSpec((1, C, T_out), lambda b, j: (b, 0, j)),
        compiler_params=pltpu.CompilerParams(
            dimension_semantics=("parallel", "parallel")),
        cost_estimate=cost,
    )(xc, halo, wstack, b2)


def _reference(x, weight, bias, kernel_size):
    stride = kernel_size // 2
    y = lax.conv_general_dilated(
        x, weight, window_strides=(stride,), padding="VALID",
        dimension_numbers=("NCH", "OIH", "NCH"))
    return jnp.maximum(y + bias[None, :, None], 0.0)


if __name__ == "__main__":
    batch, enc_channels, kernel_size = 2, 32, 16
    key = jax.random.PRNGKey(0)
    kx, kw, kb, kx2 = jax.random.split(key, 4)

    # Conv1d default init: U(-1/sqrt(fan_in), 1/sqrt(fan_in)), fan_in = 1 * kernel_size
    bound = 1.0 / (kernel_size ** 0.5)
    weight = jax.random.uniform(kw, (enc_channels, 1, kernel_size),
                                minval=-bound, maxval=bound, dtype=jnp.float32)
    bias = jax.random.uniform(kb, (enc_channels,),
                              minval=-bound, maxval=bound, dtype=jnp.float32)

    # Case 1: tiny output (single full-dim block), L_out = 15.
    x1 = jax.random.normal(kx, (batch, 1, 128), dtype=jnp.float32)
    out1 = jax.block_until_ready(encoding_layer(x1, weight, bias, kernel_size))
    ref1 = _reference(x1, weight, bias, kernel_size)
    assert out1.shape == (batch, enc_channels, 15)
    assert jnp.allclose(out1, ref1, atol=1e-5, rtol=1e-5)

    # Case 2: L_out = 301 -> lane-dense 256-wide tiles, ragged last tile + clamped halo.
    x2 = jax.random.normal(kx2, (batch, 1, 2416), dtype=jnp.float32)
    out2 = jax.block_until_ready(encoding_layer(x2, weight, bias, kernel_size))
    ref2 = _reference(x2, weight, bias, kernel_size)
    assert out2.shape == (batch, enc_channels, 301)
    assert jnp.allclose(out2, ref2, atol=1e-5, rtol=1e-5)

    print("KERNEL_OK")
</pallas_src>

<mosaic_0001>
module attributes {stable_mosaic.version = 11 : i64} {
  func.func @_enc_kernel(%arg0: i32, %arg1: i32, %arg2: memref<1x16x8xf32, #tpu.memory_space<vmem>>, %arg3: memref<1x1x1x8xf32, #tpu.memory_space<vmem>>, %arg4: memref<64x8xf32, #tpu.memory_space<vmem>>, %arg5: memref<32x1xf32, #tpu.memory_space<vmem>>, %arg6: memref<1x32x15xf32, #tpu.memory_space<vmem>>) attributes {dimension_semantics = [#tpu.dimension_semantics<parallel>, #tpu.dimension_semantics<parallel>], iteration_bounds = array<i64: 2, 1>, scalar_prefetch = 0 : i64, scratch_operands = 0 : i64, tpu.core_type = #tpu.core_type<tc>, window_params = [{transform_indices = @transform_0, window_bounds = array<i64: 1, 16, 8>}, {transform_indices = @transform_1, window_bounds = array<i64: 1, 1, 1, 8>}, {pipeline_mode = #tpu.pipeline_mode<synchronous>, transform_indices = @transform_2, window_bounds = array<i64: 64, 8>}, {pipeline_mode = #tpu.pipeline_mode<synchronous>, transform_indices = @transform_3, window_bounds = array<i64: 32, 1>}, {transform_indices = @transform_4, window_bounds = array<i64: 1, 32, 15>}]} {
    %c0 = arith.constant 0 : index
    %c0_0 = arith.constant 0 : index
    %c0_1 = arith.constant 0 : index
    %0 = vector.load %arg2[%c0, %c0_0, %c0_1] : memref<1x16x8xf32, #tpu.memory_space<vmem>>, vector<1x16x8xf32>
    %1 = vector.shape_cast %0 : vector<1x16x8xf32> to vector<16x8xf32>
    %c0_2 = arith.constant 0 : index
    %c0_3 = arith.constant 0 : index
    %2 = vector.load %arg4[%c0_2, %c0_3] : memref<64x8xf32, #tpu.memory_space<vmem>>, vector<64x8xf32>
    %cst = arith.constant dense<0.000000e+00> : vector<64x16xf32>
    %3 = tpu.matmul %2, %1, %cst {dimension_numbers = #tpu.dot_dimension_numbers<[1], [1], [0], [0], [0, 0, 1, 0], [], []>} : vector<64x8xf32>, vector<16x8xf32>, vector<64x16xf32> -> vector<64x16xf32>
    %4 = vector.extract_strided_slice %3 {offsets = [0, 0], sizes = [32, 15], strides = [1, 1]} : vector<64x16xf32> to vector<32x15xf32>
    %5 = vector.extract_strided_slice %3 {offsets = [32, 0], sizes = [32, 16], strides = [1, 1]} : vector<64x16xf32> to vector<32x16xf32>
    %c0_4 = arith.constant 0 : index
    %c0_5 = arith.constant 0 : index
    %c0_6 = arith.constant 0 : index
    %c0_7 = arith.constant 0 : index
    %6 = vector.load %arg3[%c0_4, %c0_5, %c0_6, %c0_7] : memref<1x1x1x8xf32, #tpu.memory_space<vmem>>, vector<1x1x1x8xf32>
    %7 = vector.shape_cast %6 : vector<1x1x1x8xf32> to vector<1x8xf32>
    %8 = vector.extract_strided_slice %2 {offsets = [32, 0], sizes = [32, 8], strides = [1, 1]} : vector<64x8xf32> to vector<32x8xf32>
    %9 = vector.broadcast %7 : vector<1x8xf32> to vector<32x8xf32>
    %10 = arith.mulf %8, %9 : vector<32x8xf32>
    %cst_8 = arith.constant dense<0.000000e+00> : vector<32xf32>
    %11 = vector.multi_reduction <add>, %10, %cst_8 [1] : vector<32x8xf32> to vector<32xf32>
    %12 = vector.shape_cast %11 : vector<32xf32> to vector<32x1xf32>
    %13 = vector.extract_strided_slice %5 {offsets = [0, 1], sizes = [32, 14], strides = [1, 1]} : vector<32x16xf32> to vector<32x14xf32>
    %14 = tpu.concatenate %13, %12 in 1 : vector<32x14xf32>, vector<32x1xf32> -> vector<32x15xf32>
    %15 = arith.addf %4, %14 : vector<32x15xf32>
    %c0_9 = arith.constant 0 : index
    %c0_10 = arith.constant 0 : index
    %16 = vector.load %arg5[%c0_9, %c0_10] : memref<32x1xf32, #tpu.memory_space<vmem>>, vector<32x1xf32>
    %17 = vector.broadcast %16 : vector<32x1xf32> to vector<32x15xf32>
    %18 = arith.addf %15, %17 : vector<32x15xf32>
    %cst_11 = arith.constant 0.000000e+00 : f32
    %19 = vector.broadcast %cst_11 : f32 to vector<32x15xf32>
    %20 = arith.maximumf %18, %19 : vector<32x15xf32>
    %c0_12 = arith.constant 0 : index
    %c0_13 = arith.constant 0 : index
    %c0_14 = arith.constant 0 : index
    %21 = vector.load %arg6[%c0_12, %c0_13, %c0_14] : memref<1x32x15xf32, #tpu.memory_space<vmem>>, vector<1x32x15xf32>
    %22 = vector.shape_cast %21 : vector<1x32x15xf32> to vector<32x15xf32>
    %23 = vector.shape_cast %20 : vector<32x15xf32> to vector<1x32x15xf32>
    tpu.vector_store %arg6[%c0_12, %c0_13, %c0_14], %23 {strides = array<i32>} : memref<1x32x15xf32, #tpu.memory_space<vmem>>, vector<1x32x15xf32>,
    return
  }
  func.func @transform_0(%arg0: i32, %arg1: i32) -> (i32, i32, i32) {
    %c0_i32 = arith.constant 0 : i32
    %c0_i32_0 = arith.constant 0 : i32
    return %arg0, %arg1, %c0_i32 : i32, i32, i32
  }
  func.func @transform_1(%arg0: i32, %arg1: i32) -> (i32, i32, i32, i32) {
    %c0_i32 = arith.constant 0 : i32
    %c0_i32_0 = arith.constant 0 : i32
    %c0_i32_1 = arith.constant 0 : i32
    return %arg0, %arg1, %c0_i32, %c0_i32_0 : i32, i32, i32, i32
  }
  func.func @transform_2(%arg0: i32, %arg1: i32) -> (i32, i32) {
    %c0_i32 = arith.constant 0 : i32
    %c0_i32_0 = arith.constant 0 : i32
    %c0_i32_1 = arith.constant 0 : i32
    return %c0_i32, %c0_i32_0 : i32, i32
  }
  func.func @transform_3(%arg0: i32, %arg1: i32) -> (i32, i32) {
    %c0_i32 = arith.constant 0 : i32
    %c0_i32_0 = arith.constant 0 : i32
    %c0_i32_1 = arith.constant 0 : i32
    return %c0_i32, %c0_i32_0 : i32, i32
  }
  func.func @transform_4(%arg0: i32, %arg1: i32) -> (i32, i32, i32) {
    %c0_i32 = arith.constant 0 : i32
    %c0_i32_0 = arith.constant 0 : i32
    return %arg0, %c0_i32, %arg1 : i32, i32, i32
  }
}

</mosaic_0001>

<llo_original>
// kernel: tpu_custom_call.1
$region0: #{tpu_custom_call.1}
  #allocation0 [shape = 'u32[]', space=smem, size = 0x4, offset = 0x4, fixed_abs, tag = 'smem constant byte address 0x4 - core index']
  #allocation1 [shape = 'u32[144,128]{1,0:T(1,128)}', space=vmem, size = 0x12000, scoped, tag = 'internal scratch']
  %s0 = inlined_call_operand.vmem [shape: f32[2,16,8], index: 0, kind: input, shape index: {}]
  %s1 = inlined_call_operand.vmem [shape: f32[2,1,1,8], index: 1, kind: input, shape index: {}]
  %s2 = inlined_call_operand.vmem [shape: f32[64,8], index: 2, kind: input, shape index: {}]
  %s3 = inlined_call_operand.vmem [shape: f32[32,1], index: 3, kind: input, shape index: {}]
  %s4 = inlined_call_operand.vmem [shape: f32[2,32,15], index: 4, kind: output, shape index: {}]
  %s5 = sld [smem:[#allocation0]]
  $region49: #{tpu_custom_call.1} parent=0
    _
  %s7 = ssub.s32 1, %s5
  %s8 = scalar_select 0, %s7, %s5
  loop: start=0, step=1, limit=4
  $region2: #{tpu_custom_call.1} parent=0 // loop_pre_header
    _
  $region3: #{tpu_custom_call.1} parent=0 // loop_header
    %s10 = sphi 0, %s14
    %p11 = scmp.ge.s32.totalorder %s10, 4
    %s17 = sphi 0, %s29
    %s18 = sphi 0, %s25
    %s19 = sphi 0, %s17
    %s20 = sphi 0, %s18
    %s21 = sphi 0, %s19
    %s22 = sphi 0, %s20
    %s34 = sphi 0, %s36
    %s37 = sphi 0, %s34
    %s38 = sphi 0, %s37
    %s54 = sphi 0, %s38
    %s62 = sphi 0, %s64
    %s65 = sphi 0, %s62
    %s66 = sphi 0, %s65
    %s82 = sphi 0, %s66
    %s86 = sphi 0, %s86
    %s88 = sphi 0, %s86
    %s89 = sphi 0, %s88
    %s103 = sphi 0, %s89
    %s107 = sphi 0, %s107
    %s109 = sphi 0, %s107
    %s110 = sphi 0, %s109
    %s124 = sphi 0, %s110
    %s132 = sphi 0, %s134
    %s135 = sphi 0, %s132
    %s136 = sphi 0, %s135
    %s152 = sphi 0, %s136
  $region4: #{tpu_custom_call.1} parent=0 // loop_header_branch
    %13 = sbr.rel (%p11) target = $region8
  $region5: #{tpu_custom_call.1} parent=0 // loop_body
    %s15 = ssub.s32 %s10, 1
    %s16 = ssub.s32 %s10, 2
    %s23 = sadd.s32 1, %s18
    %p24 = scmp.ge.s32.totalorder %s23, 1
    %s25 = scalar_select %p24, 0, %s23
    %s26 = sadd.s32 1, %s17
    %s27 = scalar_select %p24, %s26, %s17
    %p28 = scmp.ge.s32.totalorder %s27, 2
    %s29 = scalar_select %p28, 0, %s27
    %s30 = ssub.s32 %s17, %s29
    %s31 = ssub.s32 %s18, %s25
    %s32 = sor.u32 %s30, %s31
    %p33 = scmp.eq.s32.totalorder %s32, 0
    %s35 = sadd.s32 %s34, 1
    %s36 = scalar_select %p33, %s34, %s35
    %p39 = pneg %p33
    %p40 = scmp.eq.s32.totalorder %s10, 1
    %p41 = por %p39, %p40
    %p42 = scmp.ne.s32.totalorder %s34, %s37
    %p43 = scmp.eq.s32.totalorder %s10, 0
    %p44 = por %p42, %p43
    %p45 = scmp.ne.s32.totalorder %s34, %s37
    %p46 = scmp.eq.s32.totalorder %s15, 1
    %p47 = por %p45, %p46
    %p48 = scmp.ne.s32.totalorder %s37, %s38
    %p49 = scmp.eq.s32.totalorder %s15, 0
    %p50 = por %p48, %p49
    %p51 = scmp.ne.s32.totalorder %s37, %s38
    %p52 = scmp.eq.s32.totalorder %s16, 1
    %p53 = por %p51, %p52
    %p55 = scmp.ne.s32.totalorder %s38, %s54
    %p56 = scmp.eq.s32.totalorder %s16, 0
    %p57 = por %p55, %p56
    %s58 = ssub.s32 %s17, %s29
    %s59 = ssub.s32 %s18, %s25
    %s60 = sor.u32 %s58, %s59
    %p61 = scmp.eq.s32.totalorder %s60, 0
    %s63 = sadd.s32 %s62, 1
    %s64 = scalar_select %p61, %s62, %s63
    %p67 = pneg %p61
    %p68 = scmp.eq.s32.totalorder %s10, 1
    %p69 = por %p67, %p68
    %p70 = scmp.ne.s32.totalorder %s62, %s65
    %p71 = scmp.eq.s32.totalorder %s10, 0
    %p72 = por %p70, %p71
    %p73 = scmp.ne.s32.totalorder %s62, %s65
    %p74 = scmp.eq.s32.totalorder %s15, 1
    %p75 = por %p73, %p74
    %p76 = scmp.ne.s32.totalorder %s65, %s66
    %p77 = scmp.eq.s32.totalorder %s15, 0
    %p78 = por %p76, %p77
    %p79 = scmp.ne.s32.totalorder %s65, %s66
    %p80 = scmp.eq.s32.totalorder %s16, 1
    %p81 = por %p79, %p80
    %p83 = scmp.ne.s32.totalorder %s66, %s82
    %p84 = scmp.eq.s32.totalorder %s16, 0
    %p85 = por %p83, %p84
    %s87 = sadd.s32 %s86, 1
    %p90 = scmp.eq.s32.totalorder %s10, 1
    %p91 = scmp.ne.s32.totalorder %s86, %s88
    %p92 = scmp.eq.s32.totalorder %s10, 0
    %p93 = por %p91, %p92
    %p94 = scmp.ne.s32.totalorder %s86, %s88
    %p95 = scmp.eq.s32.totalorder %s15, 1
    %p96 = por %p94, %p95
    %p97 = scmp.ne.s32.totalorder %s88, %s89
    %p98 = scmp.eq.s32.totalorder %s15, 0
    %p99 = por %p97, %p98
    %p100 = scmp.ne.s32.totalorder %s88, %s89
    %p101 = scmp.eq.s32.totalorder %s16, 1
    %p102 = por %p100, %p101
    %p104 = scmp.ne.s32.totalorder %s89, %s103
    %p105 = scmp.eq.s32.totalorder %s16, 0
    %p106 = por %p104, %p105
    %s108 = sadd.s32 %s107, 1
    %p111 = scmp.eq.s32.totalorder %s10, 1
    %p112 = scmp.ne.s32.totalorder %s107, %s109
    %p113 = scmp.eq.s32.totalorder %s10, 0
    %p114 = por %p112, %p113
    %p115 = scmp.ne.s32.totalorder %s107, %s109
    %p116 = scmp.eq.s32.totalorder %s15, 1
    %p117 = por %p115, %p116
    %p118 = scmp.ne.s32.totalorder %s109, %s110
    %p119 = scmp.eq.s32.totalorder %s15, 0
    %p120 = por %p118, %p119
    %p121 = scmp.ne.s32.totalorder %s109, %s110
    %p122 = scmp.eq.s32.totalorder %s16, 1
    %p123 = por %p121, %p122
    %p125 = scmp.ne.s32.totalorder %s110, %s124
    %p126 = scmp.eq.s32.totalorder %s16, 0
    %p127 = por %p125, %p126
    %s128 = ssub.s32 %s17, %s29
    %s129 = ssub.s32 %s18, %s25
    %s130 = sor.u32 %s128, %s129
    %p131 = scmp.eq.s32.totalorder %s130, 0
    %s133 = sadd.s32 %s132, 1
    %s134 = scalar_select %p131, %s132, %s133
    %p137 = pneg %p131
    %p138 = scmp.eq.s32.totalorder %s10, 1
    %p139 = por %p137, %p138
    %p140 = scmp.ne.s32.totalorder %s132, %s135
    %p141 = scmp.eq.s32.totalorder %s10, 0
    %p142 = por %p140, %p141
    %p143 = scmp.ne.s32.totalorder %s132, %s135
    %p144 = scmp.eq.s32.totalorder %s15, 1
    %p145 = por %p143, %p144
    %p146 = scmp.ne.s32.totalorder %s135, %s136
    %p147 = scmp.eq.s32.totalorder %s15, 0
    %p148 = por %p146, %p147
    %p149 = scmp.ne.s32.totalorder %s135, %s136
    %p150 = scmp.eq.s32.totalorder %s16, 1
    %p151 = por %p149, %p150
    %p153 = scmp.ne.s32.totalorder %s136, %s152
    %p154 = scmp.eq.s32.totalorder %s16, 0
    %p155 = por %p153, %p154
    %p156 = scmp.le.s32.totalorder 1, %s10
    %p157 = scmp.lt.s32.totalorder %s10, 3
    %p158 = pnand %p156, %p157
    %p159 = pneg %p158
    // Predicated region
    $region9: #{tpu_custom_call.1} parent=5 // pred_check
      _
    $region10: #{tpu_custom_call.1} parent=5 // pred_check_branch
      %161 = sbr.rel (%p158) target = $region12
    $region11: #{tpu_custom_call.1} parent=5 // pred_region
      %s162 = ssub.s32 %s10, 1
      // Predicated region
      $region13: #{tpu_custom_call.1} parent=11 // pred_check
        %p163 = pneg %p99
      $region14: #{tpu_custom_call.1} parent=11 // pred_check_branch
        %165 = sbr.rel (%p163) target = $region16
      $region15: #{tpu_custom_call.1} parent=11 // pred_region
        _
      $region16: #{tpu_custom_call.1} parent=11 // pred_fallthru
        _
      // Predicated region
      $region17: #{tpu_custom_call.1} parent=11 // pred_check
        %p166 = pneg %p120
      $region18: #{tpu_custom_call.1} parent=11 // pred_check_branch
        %168 = sbr.rel (%p166) target = $region20
      $region19: #{tpu_custom_call.1} parent=11 // pred_region
        _
      $region20: #{tpu_custom_call.1} parent=11 // pred_fallthru
        _
    $region12: #{tpu_custom_call.1} parent=5 // pred_fallthru
      _
    %p169 = scmp.lt.s32.totalorder %s10, 2
    // Predicated region
    $region21: #{tpu_custom_call.1} parent=5 // pred_check
      %p170 = pneg %p169
    $region22: #{tpu_custom_call.1} parent=5 // pred_check_branch
      %172 = sbr.rel (%p170) target = $region24
    $region23: #{tpu_custom_call.1} parent=5 // pred_region
      // Predicated region
      $region25: #{tpu_custom_call.1} parent=23 // pred_check
        %p173 = pneg %p44
      $region26: #{tpu_custom_call.1} parent=23 // pred_check_branch
        %175 = sbr.rel (%p173) target = $region28
      $region27: #{tpu_custom_call.1} parent=23 // pred_region
        %s176 = smul.u32 2, %s18
        %p177 = scmp.lt.s32.totalorder %s17, 1
        %s178 = scalar_select %p177, %s17, 1
        %p179 = scmp.lt.s32.totalorder %s176, 1
        %s180 = scalar_select %p179, %s176, 1
        %s181 = smul.addr %s178, 2
        %s182 = sadd.s32 %s180, %s181
        %s183 = smul.addr %s182, 8
        %s184 = scalar_lea.vmem %s0, %s183
        %s185 = smul.u32 2, %s18
      $region28: #{tpu_custom_call.1} parent=23 // pred_fallthru
        _
      // Predicated region
      $region29: #{tpu_custom_call.1} parent=23 // pred_check
        %p186 = pneg %p72
      $region30: #{tpu_custom_call.1} parent=23 // pred_check_branch
        %188 = sbr.rel (%p186) target = $region32
      $region31: #{tpu_custom_call.1} parent=23 // pred_region
        %p189 = scmp.lt.s32.totalorder %s17, 1
        %s190 = scalar_select %p189, %s17, 1
        %p191 = scmp.lt.s32.totalorder %s18, 0
        %s192 = scalar_select %p191, %s18, 0
        %s193 = sadd.s32 %s192, %s190
        %s194 = scalar_lea.vmem %s1, %s193
      $region32: #{tpu_custom_call.1} parent=23 // pred_fallthru
        _
    $region24: #{tpu_custom_call.1} parent=5 // pred_fallthru
      _
    %p195 = scmp.le.s32.totalorder 1, %s10
    %p196 = scmp.lt.s32.totalorder %s10, 3
    %p197 = pnand %p195, %p196
    %p198 = pneg %p197
    // Predicated region
    $region33: #{tpu_custom_call.1} parent=5 // pred_check
      _
    $region34: #{tpu_custom_call.1} parent=5 // pred_check_branch
      %200 = sbr.rel (%p197) target = $region36
    $region35: #{tpu_custom_call.1} parent=5 // pred_region
      %s201 = ssub.s32 %s10, 1
      %s202 = smul.u32 2, %s20
      %p203 = scmp.lt.s32.totalorder %s19, 1
      %s204 = scalar_select %p203, %s19, 1
      %p205 = scmp.lt.s32.totalorder %s202, 1
      %s206 = scalar_select %p205, %s202, 1
      %s207 = smul.addr %s204, 2
      %s208 = sadd.s32 %s206, %s207
      %s209 = smul.addr %s208, 8
      %s210 = scalar_lea.vmem %s0, %s209
      %p211 = pneg %p50
      %p212 = pneg %p47
      %p213 = scmp.lt.s32.totalorder %s19, 1
      %s214 = scalar_select %p213, %s19, 1
      %p215 = scmp.lt.s32.totalorder %s20, 0
      %s216 = scalar_select %p215, %s20, 0
      %s217 = sadd.s32 %s216, %s214
      %s218 = scalar_lea.vmem %s1, %s217
      %p219 = pneg %p78
      %p220 = pneg %p75
      %p221 = pneg %p99
      %p222 = pneg %p96
      %p223 = pneg %p120
      %p224 = pneg %p117
      %p225 = pneg %p148
      %p226 = pneg %p145
      %p227 = scmp.lt.s32.totalorder %s19, 1
      %s228 = scalar_select %p227, %s19, 1
      %p229 = scmp.lt.s32.totalorder %s20, 0
      %s230 = scalar_select %p229, %s20, 0
      %s231 = smul.addr %s228, 4
      %s232 = sadd.s32 %s230, %s231
      %s233 = smul.addr %s232, 8
      %s234 = scalar_lea.vmem %s4, %s233
      %s235 = smul.u32 2, %s20
      %p236 = scmp.lt.s32.totalorder %s19, 1
      %s237 = scalar_select %p236, %s19, 1
      %p238 = scmp.lt.s32.totalorder %s235, 1
      %s239 = scalar_select %p238, %s235, 1
      %s240 = smul.addr %s237, 2
      %s241 = sadd.s32 %s239, %s240
      %s242 = smul.addr %s241, 8
      %s243 = scalar_lea.vmem %s0, %s242
      %s244 = smul.u32 2, %s20
      %p245 = scmp.lt.s32.totalorder %s19, 1
      %s246 = scalar_select %p245, %s19, 1
      %p247 = scmp.lt.s32.totalorder %s20, 0
      %s248 = scalar_select %p247, %s20, 0
      %s249 = sadd.s32 %s248, %s246
      %s250 = scalar_lea.vmem %s1, %s249
      %p251 = scmp.lt.s32.totalorder %s19, 1
      %s252 = scalar_select %p251, %s19, 1
      %p253 = scmp.lt.s32.totalorder %s20, 0
      %s254 = scalar_select %p253, %s20, 0
      %s255 = smul.addr %s252, 4
      %s256 = sadd.s32 %s254, %s255
      %s257 = smul.addr %s256, 8
      %s258 = scalar_lea.vmem %s4, %s257
      %v259 = vld [vmem:[%s243] sm:$0xff]
      %v260 = vld [vmem:[%s243 + $0x8] sm:$0xff]
      %v261 = vld [vmem:[%s2] sm:$0xff]
      %v262 = vld [vmem:[%s2 + $0x8] sm:$0xff]
      %v263 = vld [vmem:[%s2 + $0x10] sm:$0xff]
      %v264 = vld [vmem:[%s2 + $0x18] sm:$0xff]
      %v265 = vld [vmem:[%s2 + $0x20] sm:$0xff]
      %v266 = vld [vmem:[%s2 + $0x28] sm:$0xff]
      %v267 = vld [vmem:[%s2 + $0x30] sm:$0xff]
      %v268 = vld [vmem:[%s2 + $0x38] sm:$0xff]
      %vm269 = vcmask 64512
      %v271 = vsel %vm269, %v261, 0
      %v274 = vsel %vm269, %v262, 0
      %v277 = vsel %vm269, %v263, 0
      %v280 = vsel %vm269, %v264, 0
      %v283 = vsel %vm269, %v265, 0
      %v286 = vsel %vm269, %v266, 0
      %v289 = vsel %vm269, %v267, 0
      %v292 = vsel %vm269, %v268, 0
      %v295 = vsel %vm269, %v259, 0
      %v298 = vsel %vm269, %v260, 0
      %300 = vmatprep.subr.mxu0 0.0
      %301 = vmatpush1.xpose.msra.mxu0 %v295
      %302 = vmatprep.subr.mxu0 0.0
      %303 = vmatpush1.xpose.msra.mxu0 %v298
      %304 = vmatprep.subr.mxu0 0.0
      %305 = vmatpush1.xpose.msra.mxu0 0.0
      %306 = vmatprep.subr.mxu0 0.0
      %307 = vmatpush1.xpose.msra.mxu0 0.0
      %308 = vmatprep.subr.mxu0 0.0
      %309 = vmatpush1.xpose.msra.mxu0 0.0
      %310 = vmatprep.subr.mxu0 0.0
      %311 = vmatpush1.xpose.msra.mxu0 0.0
      %312 = vmatprep.subr.mxu0 0.0
      %313 = vmatpush1.xpose.msra.mxu0 0.0
      %314 = vmatprep.subr.mxu0 0.0
      %315 = vmatpush1.xpose.msra.mxu0 0.0
      %316 = vmatprep.subr.mxu0 0.0
      %317 = vmatpush1.xpose.msra.mxu0 0.0
      %318 = vmatprep.subr.mxu0 0.0
      %319 = vmatpush1.xpose.msra.mxu0 0.0
      %320 = vmatprep.subr.mxu0 0.0
      %321 = vmatpush1.xpose.msra.mxu0 0.0
      %322 = vmatprep.subr.mxu0 0.0
      %323 = vmatpush1.xpose.msra.mxu0 0.0
      %324 = vmatprep.subr.mxu0 0.0
      %325 = vmatpush1.xpose.msra.mxu0 0.0
      %326 = vmatprep.subr.mxu0 0.0
      %327 = vmatpush1.xpose.msra.mxu0 0.0
      %328 = vmatprep.subr.mxu0 0.0
      %329 = vmatpush1.xpose.msra.mxu0 0.0
      %330 = vmatprep.subr.mxu0 0.0
      %331 = vmatpush1.xpose.msra.mxu0 0.0
      %332 = vmatprep.subr.mxu0 0.0
      %333 = vmatpush1.xpose.msra.mxu0 0.0
      %334 = vmatprep.subr.mxu0 0.0
      %335 = vmatpush1.xpose.msra.mxu0 0.0
      %336 = vmatprep.subr.mxu0 0.0
      %337 = vmatpush1.xpose.msra.mxu0 0.0
      %338 = vmatprep.subr.mxu0 0.0
      %339 = vmatpush1.xpose.msra.mxu0 0.0
      %340 = vmatprep.subr.mxu0 0.0
      %341 = vmatpush1.xpose.msra.mxu0 0.0
      %342 = vmatprep.subr.mxu0 0.0
      %343 = vmatpush1.xpose.msra.mxu0 0.0
      %344 = vmatprep.subr.mxu0 0.0
      %345 = vmatpush1.xpose.msra.mxu0 0.0
      %346 = vmatprep.subr.mxu0 0.0
      %347 = vmatpush1.xpose.msra.mxu0 0.0
      %348 = vmatprep.subr.mxu0 0.0
      %349 = vmatpush1.xpose.msra.mxu0 0.0
      %350 = vmatprep.subr.mxu0 0.0
      %351 = vmatpush1.xpose.msra.mxu0 0.0
      %352 = vmatprep.subr.mxu0 0.0
      %353 = vmatpush1.xpose.msra.mxu0 0.0
      %354 = vmatprep.subr.mxu0 0.0
      %355 = vmatpush1.xpose.msra.mxu0 0.0
      %356 = vmatprep.subr.mxu0 0.0
      %357 = vmatpush1.xpose.msra.mxu0 0.0
      %358 = vmatprep.subr.mxu0 0.0
      %359 = vmatpush1.xpose.msra.mxu0 0.0
      %360 = vmatprep.subr.mxu0 0.0
      %361 = vmatpush1.xpose.msra.mxu0 0.0
      %362 = vmatprep.subr.mxu0 0.0
      %363 = vmatpush1.xpose.msra.mxu0 0.0
      %364 = vmatprep.mubr.f32.mxu0 0.0
      %365 = vmatmul.mubr.f32.gmra.mrb[0].mxu0 %v271
      %v366 = vpop.f32.mrb[0].mxu0
      %v367 = vadd.f32 0.0, %v366
      %v368 = vpop.f32.mrb[0].mxu0
      %369 = vmatprep.mubr.f32.mxu0 0.0
      %370 = vmatmul.mubr.f32.gmra.mrb[0].mxu0 %v274
      %v371 = vpop.f32.mrb[0].mxu0
      %v372 = vadd.f32 0.0, %v371
      %v373 = vpop.f32.mrb[0].mxu0
      %374 = vmatprep.mubr.f32.mxu0 0.0
      %375 = vmatmul.mubr.f32.gmra.mrb[0].mxu0 %v277
      %v376 = vpop.f32.mrb[0].mxu0
      %v377 = vadd.f32 0.0, %v376
      %v378 = vpop.f32.mrb[0].mxu0
      %379 = vmatprep.mubr.f32.mxu0 0.0
      %380 = vmatmul.mubr.f32.gmra.mrb[0].mxu0 %v280
      %v381 = vpop.f32.mrb[0].mxu0
      %v382 = vadd.f32 0.0, %v381
      %v383 = vpop.f32.mrb[0].mxu0
      %384 = vmatprep.mubr.f32.mxu0 0.0
      %385 = vmatmul.mubr.f32.gmra.mrb[0].mxu0 %v283
      %v386 = vpop.f32.mrb[0].mxu0
      %v387 = vadd.f32 0.0, %v386
      %v388 = vpop.f32.mrb[0].mxu0
      %389 = vmatprep.mubr.f32.mxu0 0.0
      %390 = vmatmul.mubr.f32.gmra.mrb[0].mxu0 %v286
      %v391 = vpop.f32.mrb[0].mxu0
      %v392 = vadd.f32 0.0, %v391
      %v393 = vpop.f32.mrb[0].mxu0
      %394 = vmatprep.mubr.f32.mxu0 0.0
      %395 = vmatmul.mubr.f32.gmra.mrb[0].mxu0 %v289
      %v396 = vpop.f32.mrb[0].mxu0
      %v397 = vadd.f32 0.0, %v396
      %v398 = vpop.f32.mrb[0].mxu0
      %399 = vmatprep.mubr.f32.mxu0 0.0
      %400 = vmatmul.mubr.f32.gmra.mrb[0].mxu0 %v292
      %v401 = vpop.f32.mrb[0].mxu0
      %v402 = vadd.f32 0.0, %v401
      %v403 = vpop.f32.mrb[0].mxu0
      %404 = vdwg.mxu0
      %v405 = vld [vmem:[%s250] sm:$0x1]
      %v407 = vlaneseq
      %v408 = vshrl.u32 %v407, 7
      %v409 = vsub.s32 0, %v408
      %v410 = vrot.slane %v405, %v409
      %v412 = vmul.f32 %v265, %v410
      %v413 = vmul.f32 %v266, %v410
      %v414 = vmul.f32 %v267, %v410
      %v415 = vmul.f32 %v268, %v410
      %v416 = vsel %vm269, %v412, 0.0
      %417 = vadd.xlane.f32.xlu0 %v416
      %v418 = vpop.xlane.xlu0 %417
      %v419 = vsel %vm269, %v413, 0.0
      %420 = vadd.xlane.f32.xlu0 %v419
      %v421 = vpop.xlane.xlu0 %420
      %v422 = vsel %vm269, %v414, 0.0
      %423 = vadd.xlane.f32.xlu0 %v422
      %v424 = vpop.xlane.xlu0 %423
      %v425 = vsel %vm269, %v415, 0.0
      %426 = vadd.xlane.f32.xlu0 %v425
      %v427 = vpop.xlane.xlu0 %426
      %432 = vrot.lane.b32.xlu0 %v387, 127
      %v433 = vpop.permute.xlu0 %432
      %434 = vrot.lane.b32.xlu0 %v392, 127
      %v435 = vpop.permute.xlu0 %434
      %436 = vrot.lane.b32.xlu0 %v397, 127
      %v437 = vpop.permute.xlu0 %436
      %438 = vrot.lane.b32.xlu0 %v402, 127
      %v439 = vpop.permute.xlu0 %438
      %vm444 = vcmask 113664
      %v445 = vsel %vm444, %v433, %v418
      %v446 = vsel %vm444, %v435, %v421
      %v447 = vsel %vm444, %v437, %v424
      %v448 = vsel %vm444, %v439, %v427
      %v449 = vadd.f32 %v367, %v445
      %v450 = vadd.f32 %v372, %v446
      %v451 = vadd.f32 %v377, %v447
      %v452 = vadd.f32 %v382, %v448
      %v453 = vld [vmem:[%s3] sm:$0xff]
      %v454 = vld [vmem:[%s3 + $0x8] sm:$0xff]
      %v455 = vld [vmem:[%s3 + $0x10] sm:$0xff]
      %v456 = vld [vmem:[%s3 + $0x18] sm:$0xff]
      %458 = vset.pattern.permute.xlu0 0
      %459 = vperm.xlu0 %458, %v453
      %v460 = vpop.permute.xlu0 %459
      %463 = vset.pattern.permute.xlu0 0
      %464 = vperm.xlu0 %463, %v454
      %v465 = vpop.permute.xlu0 %464
      %468 = vset.pattern.permute.xlu0 0
      %469 = vperm.xlu0 %468, %v455
      %v470 = vpop.permute.xlu0 %469
      %473 = vset.pattern.permute.xlu0 0
      %474 = vperm.xlu0 %473, %v456
      %v475 = vpop.permute.xlu0 %474
      %v477 = vadd.f32 %v449, %v460
      %v478 = vadd.f32 %v450, %v465
      %v479 = vadd.f32 %v451, %v470
      %v480 = vadd.f32 %v452, %v475
      %v481 = vmax.f32 %v477, 0.0
      %v482 = vmax.f32 %v478, 0.0
      %v483 = vmax.f32 %v479, 0.0
      %v484 = vmax.f32 %v480, 0.0
      %vm485 = vcmask 121856
      %486 = vst.msk [vmem:[%s258] sm:$0xff] %vm485, %v481
      %487 = vst.msk [vmem:[%s258 + $0x8] sm:$0xff] %vm485, %v482
      %488 = vst.msk [vmem:[%s258 + $0x10] sm:$0xff] %vm485, %v483
      %489 = vst.msk [vmem:[%s258 + $0x18] sm:$0xff] %vm485, %v484
      %p490 = scmp.lt.s32.totalorder %s19, 1
      %s491 = scalar_select %p490, %s19, 1
      %p492 = scmp.lt.s32.totalorder %s20, 0
      %s493 = scalar_select %p492, %s20, 0
      %s494 = smul.addr %s491, 4
      %s495 = sadd.s32 %s493, %s494
      %s496 = smul.addr %s495, 8
      %s497 = scalar_lea.vmem %s4, %s496
      // Predicated region
      $region37: #{tpu_custom_call.1} parent=35 // pred_check
        %p498 = pneg %p145
      $region38: #{tpu_custom_call.1} parent=35 // pred_check_branch
        %500 = sbr.rel (%p498) target = $region40
      $region39: #{tpu_custom_call.1} parent=35 // pred_region
        _
      $region40: #{tpu_custom_call.1} parent=35 // pred_fallthru
        _
    $region36: #{tpu_custom_call.1} parent=5 // pred_fallthru
      _
    %p501 = scmp.le.s32.totalorder 2, %s10
    // Predicated region
    $region41: #{tpu_custom_call.1} parent=5 // pred_check
      %p502 = pneg %p501
    $region42: #{tpu_custom_call.1} parent=5 // pred_check_branch
      %504 = sbr.rel (%p502) target = $region44
    $region43: #{tpu_custom_call.1} parent=5 // pred_region
      %s505 = ssub.s32 %s10, 2
      // Predicated region
      $region45: #{tpu_custom_call.1} parent=43 // pred_check
        %p506 = pneg %p151
      $region46: #{tpu_custom_call.1} parent=43 // pred_check_branch
        %508 = sbr.rel (%p506) target = $region48
      $region47: #{tpu_custom_call.1} parent=43 // pred_region
        %p509 = scmp.lt.s32.totalorder %s21, 1
        %s510 = scalar_select %p509, %s21, 1
        %p511 = scmp.lt.s32.totalorder %s22, 0
        %s512 = scalar_select %p511, %s22, 0
        %s513 = smul.addr %s510, 4
        %s514 = sadd.s32 %s512, %s513
        %s515 = smul.addr %s514, 8
        %s516 = scalar_lea.vmem %s4, %s515
      $region48: #{tpu_custom_call.1} parent=43 // pred_fallthru
        _
    $region44: #{tpu_custom_call.1} parent=5 // pred_fallthru
      _
  $region6: #{tpu_custom_call.1} parent=0 // loop_footer
    %s14 = sadd.s32 1, %s10
  $region7: #{tpu_custom_call.1} parent=0 // loop_footer_branch
    %9 = sbr.rel target = $region3
  $region8: #{tpu_custom_call.1} parent=0 // loop_exit
    _

</llo_original>
